<compile_context>
chip_gen: v6e
topology: v6e:2x2x1
jax: 0.10.0
libtpu: 0.0.40
codegen_flags: <defaults>
</compile_context>

<pallas_src>
import jax
import jax.numpy as jnp
from jax.experimental import pallas as pl
from jax.experimental.pallas import tpu as pltpu


def _round_up(x, m):
    return (x + m - 1) // m * m


def _choose_tile(dim, preferred, multiple):
    """Largest tile <= preferred that divides `dim` and is a multiple of
    `multiple`; falls back to the full dim (always a valid block)."""
    t = min(preferred, dim)
    t -= t % multiple
    while t >= multiple:
        if dim % t == 0:
            return t
        t -= multiple
    return dim


def _logits_kernel(h_ref, wt_ref, o_ref):
    # h_ref  : VMEM [tb, E]   hidden rows for this batch tile
    # wt_ref : VMEM [tv, E]   WT.weight rows (native layout) for this vocab tile
    # o_ref  : VMEM [tb, tv]  logits tile
    # NT contraction (contract on E of both operands) == hidden @ wt_tile.T,
    # so WT streams in its native [V, E] layout; MXU accumulates in f32.
    o_ref[...] = jax.lax.dot_general(
        h_ref[...],
        wt_ref[...],
        dimension_numbers=(((1,), (1,)), ((), ())),
        preferred_element_type=jnp.float32,
    ).astype(o_ref.dtype)


def word2vec_output_projection(hidden, wt_weight, *, out_dtype=jnp.float32,
                               tb_preferred=1024, tv_preferred=2048):
    """logits = hidden @ wt_weight.T  via a tiled Pallas kernel.

    hidden    : [B, E]
    wt_weight : [V, E]  (nn.Linear(embedding_size, voc_size).weight, native)
    returns   : [B, V]
    """
    B, E = hidden.shape
    V, E2 = wt_weight.shape
    assert E2 == E

    # Pad to TPU-friendly extents (sublane multiple of 8, lane multiple of 128).
    B_pad = _round_up(B, 8)
    V_pad = _round_up(V, 128)
    if B_pad != B:
        hidden = jnp.pad(hidden, ((0, B_pad - B), (0, 0)))
    if V_pad != V:
        wt_weight = jnp.pad(wt_weight, ((0, V_pad - V), (0, 0)))

    h_bytes = jnp.dtype(hidden.dtype).itemsize
    w_bytes = jnp.dtype(wt_weight.dtype).itemsize
    o_bytes = jnp.dtype(out_dtype).itemsize

    # Batch tile: as large as possible (WT reuse) up to tb_preferred.
    tb = _choose_tile(B_pad, min(tb_preferred, B_pad), 8)

    # VMEM-budget-aware vocab tile: double-buffered (wt + out) tiles must stay
    # comfortably inside v7x's 64 MiB physical VMEM.
    budget = 20 * 1024 * 1024
    fixed = 2 * tb * E * h_bytes
    per_tv = 2 * (E * w_bytes + tb * o_bytes)
    tv_fit = max(128, (budget - fixed) // per_tv // 128 * 128)
    tv_pref = min(tv_preferred, tv_fit)
    # Give both v7x TensorCores work: aim for at least 2 vocab tiles.
    if V_pad >= 256 and V_pad // tv_pref < 2:
        tv_pref = max(128, (V_pad // 2) // 128 * 128)
    tv = _choose_tile(V_pad, tv_pref, 128)

    # Vocab axis OUTER so the WT tile block index only changes once per vocab
    # tile -> each WT tile is fetched from HBM exactly once per forward.
    grid = (V_pad // tv, B_pad // tb)

    est_vmem = 2 * (tb * E * h_bytes + tv * E * w_bytes + tb * tv * o_bytes)
    cost = pl.CostEstimate(
        flops=2 * B_pad * V_pad * E,
        transcendentals=0,
        bytes_accessed=(V_pad * E * w_bytes                 # WT streamed once
                        + grid[0] * B_pad * E * h_bytes     # hidden per vocab tile
                        + B_pad * V_pad * o_bytes),         # logits written once
    )

    out = pl.pallas_call(
        _logits_kernel,
        out_shape=jax.ShapeDtypeStruct((B_pad, V_pad), out_dtype),
        grid_spec=pltpu.PrefetchScalarGridSpec(
            num_scalar_prefetch=0,
            grid=grid,
            in_specs=[
                pl.BlockSpec((tb, E), lambda j, i: (i, 0)),   # hidden (tiny)
                pl.BlockSpec((tv, E), lambda j, i: (j, 0)),   # WT rows, native
            ],
            out_specs=pl.BlockSpec((tb, tv), lambda j, i: (i, j)),
        ),
        compiler_params=pltpu.CompilerParams(
            dimension_semantics=("parallel", "parallel"),
            vmem_limit_bytes=int(min(48 * 1024 * 1024,
                                     max(32 * 1024 * 1024, 2 * est_vmem))),
        ),
        cost_estimate=cost,
    )(hidden, wt_weight)

    if B_pad != B or V_pad != V:
        out = out[:B, :V]
    return out


def word2vec_forward_from_ids(word_ids, w_weight, wt_weight, **kwargs):
    """Same forward, but takes integer word ids directly (skips one-hot/argmax)."""
    hidden = jnp.take(w_weight, word_ids, axis=1).T          # [B, E]
    hidden = hidden.astype(wt_weight.dtype)
    return word2vec_output_projection(hidden, wt_weight, **kwargs)


def word2vec_forward(x, w_weight, wt_weight, *, assume_one_hot=True,
                     out_dtype=jnp.float32, tb_preferred=1024,
                     tv_preferred=2048):
    """Forward of the PyTorch Word2Vec module.

    x         : [B, V]  skip-gram inputs (one-hot float for the fast path)
    w_weight  : [E, V]  nn.Linear(voc_size, embedding_size).weight
    wt_weight : [V, E]  nn.Linear(embedding_size, voc_size).weight
    returns   : [B, V]  logits = (x @ w_weight.T) @ wt_weight.T
    """
    B, V = x.shape
    E = w_weight.shape[0]
    assert w_weight.shape == (E, V)
    assert wt_weight.shape == (V, E)

    if assume_one_hot:
        # REQUIREMENT: rows of x must be strictly one-hot (standard skip-gram).
        # Then X @ W.T is exactly a column gather of W (reads only B*E values).
        word_ids = jnp.argmax(x, axis=-1)
        hidden = jnp.take(w_weight, word_ids, axis=1).T      # [B, E]
    else:
        # Faithful dense first linear for arbitrary (multi-hot/weighted) X;
        # contraction written so no full weight transpose is materialized.
        hidden = jnp.einsum('bv,ev->be', x, w_weight)

    hidden = hidden.astype(wt_weight.dtype)
    return word2vec_output_projection(
        hidden, wt_weight, out_dtype=out_dtype,
        tb_preferred=tb_preferred, tv_preferred=tv_preferred)


if __name__ == "__main__":
    # Small, TPU-friendly demo shapes (one-hot skip-gram batch).
    batch_size = 16
    voc_size = 2048
    embedding_size = 128

    key = jax.random.PRNGKey(0)
    k_idx, k_w, k_wt = jax.random.split(key, 3)

    ids = jax.random.randint(k_idx, (batch_size,), 0, voc_size)
    x = jax.nn.one_hot(ids, voc_size, dtype=jnp.float32)

    # nn.Linear weight shapes (bias=False), deterministic init, stored in bf16
    # so the dominant [V, E] HBM stream is half-width (MXU accumulates in f32).
    w_weight = ((jax.random.uniform(k_w, (embedding_size, voc_size),
                                    jnp.float32) - 0.5) * 0.2
                ).astype(jnp.bfloat16)
    wt_weight = ((jax.random.uniform(k_wt, (voc_size, embedding_size),
                                     jnp.float32) - 0.5) * 0.2
                 ).astype(jnp.bfloat16)

    fwd = jax.jit(word2vec_forward)
    out = jax.block_until_ready(fwd(x, w_weight, wt_weight))

    # Reference: the PyTorch forward formula at highest precision on the same
    # (bf16-stored) weights.
    ref = jnp.dot(
        jnp.dot(x, w_weight.astype(jnp.float32).T,
                precision=jax.lax.Precision.HIGHEST),
        wt_weight.astype(jnp.float32).T,
        precision=jax.lax.Precision.HIGHEST,
    )
    assert out.shape == (batch_size, voc_size)
    max_err = float(jnp.max(jnp.abs(out - ref)))
    assert jnp.allclose(out, ref, atol=2e-3, rtol=2e-3), max_err
    print("KERNEL_OK")
</pallas_src>

<mosaic_0001>
module attributes {stable_mosaic.version = 11 : i64} {
  func.func @_logits_kernel(%arg0: i32, %arg1: i32, %arg2: memref<16x128xbf16, #tpu.memory_space<vmem>>, %arg3: memref<1024x128xbf16, #tpu.memory_space<vmem>>, %arg4: memref<16x1024xf32, #tpu.memory_space<vmem>>) attributes {dimension_semantics = [#tpu.dimension_semantics<parallel>, #tpu.dimension_semantics<parallel>], iteration_bounds = array<i64: 2, 1>, scalar_prefetch = 0 : i64, scratch_operands = 0 : i64, tpu.core_type = #tpu.core_type<tc>, window_params = [{transform_indices = @transform_0, window_bounds = array<i64: 16, 128>}, {transform_indices = @transform_1, window_bounds = array<i64: 1024, 128>}, {transform_indices = @transform_2, window_bounds = array<i64: 16, 1024>}]} {
    %c0 = arith.constant 0 : index
    %c0_0 = arith.constant 0 : index
    %0 = vector.load %arg2[%c0, %c0_0] : memref<16x128xbf16, #tpu.memory_space<vmem>>, vector<16x128xbf16>
    %c0_1 = arith.constant 0 : index
    %c0_2 = arith.constant 0 : index
    %1 = vector.load %arg3[%c0_1, %c0_2] : memref<1024x128xbf16, #tpu.memory_space<vmem>>, vector<1024x128xbf16>
    %cst = arith.constant dense<0.000000e+00> : vector<16x1024xf32>
    %2 = tpu.matmul %0, %1, %cst {dimension_numbers = #tpu.dot_dimension_numbers<[1], [1], [0], [0], [0, 0, 1, 0], [], []>} : vector<16x128xbf16>, vector<1024x128xbf16>, vector<16x1024xf32> -> vector<16x1024xf32>
    %c0_3 = arith.constant 0 : index
    %c0_4 = arith.constant 0 : index
    %3 = vector.load %arg4[%c0_3, %c0_4] : memref<16x1024xf32, #tpu.memory_space<vmem>>, vector<16x1024xf32>
    tpu.vector_store %arg4[%c0_3, %c0_4], %2 {strides = array<i32>} : memref<16x1024xf32, #tpu.memory_space<vmem>>, vector<16x1024xf32>,
    return
  }
  func.func @transform_0(%arg0: i32, %arg1: i32) -> (i32, i32) {
    %c0_i32 = arith.constant 0 : i32
    %c0_i32_0 = arith.constant 0 : i32
    return %arg1, %c0_i32 : i32, i32
  }
  func.func @transform_1(%arg0: i32, %arg1: i32) -> (i32, i32) {
    %c0_i32 = arith.constant 0 : i32
    %c0_i32_0 = arith.constant 0 : i32
    return %arg0, %c0_i32 : i32, i32
  }
  func.func @transform_2(%arg0: i32, %arg1: i32) -> (i32, i32) {
    %c0_i32 = arith.constant 0 : i32
    return %arg1, %arg0 : i32, i32
  }
}

</mosaic_0001>

<llo_original>
// kernel: word2vec_forward.1
$region0: #{word2vec_forward.1}
  #allocation0 [shape = 'u32[]', space=smem, size = 0x4, offset = 0x4, fixed_abs, tag = 'smem constant byte address 0x4 - core index']
  #allocation1 [shape = 'u32[144,128]{1,0:T(1,128)}', space=vmem, size = 0x12000, scoped, tag = 'internal scratch']
  %s0 = inlined_call_operand.vmem [shape: bf16[16,128], index: 0, kind: input, shape index: {}]
  %s1 = inlined_call_operand.vmem [shape: bf16[2048,128], index: 1, kind: input, shape index: {}]
  %s2 = inlined_call_operand.hbm [shape: f32[16,2048], index: 2, kind: output, shape index: {}]
  %s3 = sld [smem:[#allocation0]]
  $region41: #{word2vec_forward.1} parent=0
    _
  %s5 = ssub.s32 1, %s3
  %s6 = scalar_select 0, %s5, %s3
  $region1: #{word2vec_forward.1} parent=0
    #allocation2 [shape = 'u8[131072]{0}', space=vmem, size = 0x20000, scoped, tag = 'output window, operand 0']
    #allocation3 [shape = 's32[2]{0}', space=sflag, size = 0x8, scoped, tag = 'scoped memory for word2vec_forward.1']
    %7 = vsyncpa [#allocation3], 0
    %s8 = scalar_lea.sflag [#allocation3], 1
    %9 = vsyncpa %s8, 0
    loop: start=0, step=1, limit=4
    $region2: #{word2vec_forward.1} parent=1 // loop_pre_header
      _
    $region3: #{word2vec_forward.1} parent=1 // loop_header
      %s11 = sphi 0, %s15
      %p12 = scmp.ge.s32.totalorder %s11, 4
      %s18 = sphi 0, %s30
      %s19 = sphi 0, %s26
      %s20 = sphi 0, %s18
      %s21 = sphi 0, %s19
      %s22 = sphi 0, %s20
      %s23 = sphi 0, %s21
      %s33 = sphi 0, %s35
      %s36 = sphi 0, %s33
      %s37 = sphi 0, %s36
      %s53 = sphi 0, %s37
      %s59 = sphi 0, %s61
      %s62 = sphi 0, %s59
      %s63 = sphi 0, %s62
      %s79 = sphi 0, %s63
      %s87 = sphi 0, %s89
      %s90 = sphi 0, %s87
      %s91 = sphi 0, %s90
      %s107 = sphi 0, %s91
    $region4: #{word2vec_forward.1} parent=1 // loop_header_branch
      %14 = sbr.rel (%p12) target = $region8
    $region5: #{word2vec_forward.1} parent=1 // loop_body
      %s16 = ssub.s32 %s11, 1
      %s17 = ssub.s32 %s11, 2
      %s24 = sadd.s32 1, %s19
      %p25 = scmp.ge.s32.totalorder %s24, 1
      %s26 = scalar_select %p25, 0, %s24
      %s27 = sadd.s32 1, %s18
      %s28 = scalar_select %p25, %s27, %s18
      %p29 = scmp.ge.s32.totalorder %s28, 2
      %s30 = scalar_select %p29, 0, %s28
      %s31 = ssub.s32 %s19, %s26
      %p32 = scmp.eq.s32.totalorder %s31, 0
      %s34 = sadd.s32 %s33, 1
      %s35 = scalar_select %p32, %s33, %s34
      %p38 = pneg %p32
      %p39 = scmp.eq.s32.totalorder %s11, 1
      %p40 = por %p38, %p39
      %p41 = scmp.ne.s32.totalorder %s33, %s36
      %p42 = scmp.eq.s32.totalorder %s11, 0
      %p43 = por %p41, %p42
      %p44 = scmp.ne.s32.totalorder %s33, %s36
      %p45 = scmp.eq.s32.totalorder %s16, 1
      %p46 = por %p44, %p45
      %p47 = scmp.ne.s32.totalorder %s36, %s37
      %p48 = scmp.eq.s32.totalorder %s16, 0
      %p49 = por %p47, %p48
      %p50 = scmp.ne.s32.totalorder %s36, %s37
      %p51 = scmp.eq.s32.totalorder %s17, 1
      %p52 = por %p50, %p51
      %p54 = scmp.ne.s32.totalorder %s37, %s53
      %p55 = scmp.eq.s32.totalorder %s17, 0
      %p56 = por %p54, %p55
      %s57 = ssub.s32 %s18, %s30
      %p58 = scmp.eq.s32.totalorder %s57, 0
      %s60 = sadd.s32 %s59, 1
      %s61 = scalar_select %p58, %s59, %s60
      %p64 = pneg %p58
      %p65 = scmp.eq.s32.totalorder %s11, 1
      %p66 = por %p64, %p65
      %p67 = scmp.ne.s32.totalorder %s59, %s62
      %p68 = scmp.eq.s32.totalorder %s11, 0
      %p69 = por %p67, %p68
      %p70 = scmp.ne.s32.totalorder %s59, %s62
      %p71 = scmp.eq.s32.totalorder %s16, 1
      %p72 = por %p70, %p71
      %p73 = scmp.ne.s32.totalorder %s62, %s63
      %p74 = scmp.eq.s32.totalorder %s16, 0
      %p75 = por %p73, %p74
      %p76 = scmp.ne.s32.totalorder %s62, %s63
      %p77 = scmp.eq.s32.totalorder %s17, 1
      %p78 = por %p76, %p77
      %p80 = scmp.ne.s32.totalorder %s63, %s79
      %p81 = scmp.eq.s32.totalorder %s17, 0
      %p82 = por %p80, %p81
      %s83 = ssub.s32 %s19, %s26
      %s84 = ssub.s32 %s18, %s30
      %s85 = sor.u32 %s83, %s84
      %p86 = scmp.eq.s32.totalorder %s85, 0
      %s88 = sadd.s32 %s87, 1
      %s89 = scalar_select %p86, %s87, %s88
      %p92 = pneg %p86
      %p93 = scmp.eq.s32.totalorder %s11, 1
      %p94 = por %p92, %p93
      %p95 = scmp.ne.s32.totalorder %s87, %s90
      %p96 = scmp.eq.s32.totalorder %s11, 0
      %p97 = por %p95, %p96
      %p98 = scmp.ne.s32.totalorder %s87, %s90
      %p99 = scmp.eq.s32.totalorder %s16, 1
      %p100 = por %p98, %p99
      %p101 = scmp.ne.s32.totalorder %s90, %s91
      %p102 = scmp.eq.s32.totalorder %s16, 0
      %p103 = por %p101, %p102
      %p104 = scmp.ne.s32.totalorder %s90, %s91
      %p105 = scmp.eq.s32.totalorder %s17, 1
      %p106 = por %p104, %p105
      %p108 = scmp.ne.s32.totalorder %s91, %s107
      %p109 = scmp.eq.s32.totalorder %s17, 0
      %p110 = por %p108, %p109
      %p111 = scmp.le.s32.totalorder 1, %s11
      %p112 = scmp.lt.s32.totalorder %s11, 3
      %p113 = pnand %p111, %p112
      %p114 = pneg %p113
      // Predicated region
      $region9: #{word2vec_forward.1} parent=5 // pred_check
        _
      $region10: #{word2vec_forward.1} parent=5 // pred_check_branch
        %116 = sbr.rel (%p113) target = $region12
      $region11: #{word2vec_forward.1} parent=5 // pred_region
        %s117 = ssub.s32 %s11, 1
        // Predicated region
        $region13: #{word2vec_forward.1} parent=11 // pred_check
          %p118 = pneg %p49
        $region14: #{word2vec_forward.1} parent=11 // pred_check_branch
          %120 = sbr.rel (%p118) target = $region16
        $region15: #{word2vec_forward.1} parent=11 // pred_region
          %s121 = smul.u32 2, %s21
          %p122 = scmp.lt.s32.totalorder %s121, 1
          %s123 = scalar_select %p122, %s121, 1
          %s124 = smul.addr %s123, 4
          %s125 = scalar_lea.vmem %s0, %s124
          %s126 = smul.u32 2, %s21
        $region16: #{word2vec_forward.1} parent=11 // pred_fallthru
          _
      $region12: #{word2vec_forward.1} parent=5 // pred_fallthru
        _
      %p127 = scmp.lt.s32.totalorder %s11, 2
      // Predicated region
      $region17: #{word2vec_forward.1} parent=5 // pred_check
        %p128 = pneg %p127
      $region18: #{word2vec_forward.1} parent=5 // pred_check_branch
        %130 = sbr.rel (%p128) target = $region20
      $region19: #{word2vec_forward.1} parent=5 // pred_region
        // Predicated region
        $region21: #{word2vec_forward.1} parent=19 // pred_check
          %p131 = pneg %p69
        $region22: #{word2vec_forward.1} parent=19 // pred_check_branch
          %133 = sbr.rel (%p131) target = $region24
        $region23: #{word2vec_forward.1} parent=19 // pred_region
          %s134 = smul.u32 128, %s18
          %p135 = scmp.lt.s32.totalorder %s134, 255
          %s136 = scalar_select %p135, %s134, 255
          %s137 = smul.addr %s136, 4
          %s138 = scalar_lea.vmem %s1, %s137
          %s139 = smul.u32 128, %s18
        $region24: #{word2vec_forward.1} parent=19 // pred_fallthru
          _
      $region20: #{word2vec_forward.1} parent=5 // pred_fallthru
        _
      %p140 = scmp.le.s32.totalorder 1, %s11
      %p141 = scmp.lt.s32.totalorder %s11, 3
      %p142 = pnand %p140, %p141
      %p143 = pneg %p142
      // Predicated region
      $region25: #{word2vec_forward.1} parent=5 // pred_check
        _
      $region26: #{word2vec_forward.1} parent=5 // pred_check_branch
        %145 = sbr.rel (%p142) target = $region28
      $region27: #{word2vec_forward.1} parent=5 // pred_region
        %s146 = ssub.s32 %s11, 1
        %s147 = smul.u32 2, %s21
        %p148 = scmp.lt.s32.totalorder %s147, 1
        %s149 = scalar_select %p148, %s147, 1
        %s150 = smul.addr %s149, 4
        %s151 = scalar_lea.vmem %s0, %s150
        %p152 = pneg %p49
        %p153 = pneg %p46
        %s154 = smul.u32 128, %s20
        %p155 = scmp.lt.s32.totalorder %s154, 255
        %s156 = scalar_select %p155, %s154, 255
        %s157 = smul.addr %s156, 4
        %s158 = scalar_lea.vmem %s1, %s157
        %p159 = pneg %p75
        %p160 = pneg %p72
        %p161 = pneg %p103
        %p162 = pneg %p100
        %s163 = sand.u32 %s90, 1
        %s164 = scalar_lea.sflag [#allocation3], %s163
        %s165 = sand.u32 %s90, 1
        %s166 = smul.addr %s165, 128
        %s167 = scalar_lea.vmem [#allocation2], %s166
        %s168 = smul.u32 2, %s21
        %p169 = scmp.lt.s32.totalorder %s168, 1
        %s170 = scalar_select %p169, %s168, 1
        %s171 = smul.addr %s170, 4
        %s172 = scalar_lea.vmem %s0, %s171
        %s173 = smul.u32 2, %s21
        %s174 = smul.u32 128, %s20
        %p175 = scmp.lt.s32.totalorder %s174, 255
        %s176 = scalar_select %p175, %s174, 255
        %s177 = smul.addr %s176, 4
        %s178 = scalar_lea.vmem %s1, %s177
        %s179 = smul.u32 128, %s20
        %s180 = smul.u32 2, %s21
        %s181 = smul.u32 8, %s20
        %v183 = vld [vmem:[%s172] sm:$0xf]
        %v184 = vld [vmem:[%s172 + $0x4] sm:$0xf]
        %v185 = vld [vmem:[%s178] sm:$0xf]
        %v186 = vld [vmem:[%s178 + $0x4] sm:$0xf]
        %v187 = vld [vmem:[%s178 + $0x8] sm:$0xf]
        %v188 = vld [vmem:[%s178 + $0xc] sm:$0xf]
        %v189 = vld [vmem:[%s178 + $0x10] sm:$0xf]
        %v190 = vld [vmem:[%s178 + $0x14] sm:$0xf]
        %v191 = vld [vmem:[%s178 + $0x18] sm:$0xf]
        %v192 = vld [vmem:[%s178 + $0x1c] sm:$0xf]
        %v193 = vld [vmem:[%s178 + $0x20] sm:$0xf]
        %v194 = vld [vmem:[%s178 + $0x24] sm:$0xf]
        %v195 = vld [vmem:[%s178 + $0x28] sm:$0xf]
        %v196 = vld [vmem:[%s178 + $0x2c] sm:$0xf]
        %v197 = vld [vmem:[%s178 + $0x30] sm:$0xf]
        %v198 = vld [vmem:[%s178 + $0x34] sm:$0xf]
        %v199 = vld [vmem:[%s178 + $0x38] sm:$0xf]
        %v200 = vld [vmem:[%s178 + $0x3c] sm:$0xf]
        %v201 = vld [vmem:[%s178 + $0x40] sm:$0xf]
        %v202 = vld [vmem:[%s178 + $0x44] sm:$0xf]
        %v203 = vld [vmem:[%s178 + $0x48] sm:$0xf]
        %v204 = vld [vmem:[%s178 + $0x4c] sm:$0xf]
        %v205 = vld [vmem:[%s178 + $0x50] sm:$0xf]
        %v206 = vld [vmem:[%s178 + $0x54] sm:$0xf]
        %v207 = vld [vmem:[%s178 + $0x58] sm:$0xf]
        %v208 = vld [vmem:[%s178 + $0x5c] sm:$0xf]
        %v209 = vld [vmem:[%s178 + $0x60] sm:$0xf]
        %v210 = vld [vmem:[%s178 + $0x64] sm:$0xf]
        %v211 = vld [vmem:[%s178 + $0x68] sm:$0xf]
        %v212 = vld [vmem:[%s178 + $0x6c] sm:$0xf]
        %v213 = vld [vmem:[%s178 + $0x70] sm:$0xf]
        %v214 = vld [vmem:[%s178 + $0x74] sm:$0xf]
        %v215 = vld [vmem:[%s178 + $0x78] sm:$0xf]
        %v216 = vld [vmem:[%s178 + $0x7c] sm:$0xf]
        %v217 = vld [vmem:[%s178 + $0x80] sm:$0xf]
        %v218 = vld [vmem:[%s178 + $0x84] sm:$0xf]
        %v219 = vld [vmem:[%s178 + $0x88] sm:$0xf]
        %v220 = vld [vmem:[%s178 + $0x8c] sm:$0xf]
        %v221 = vld [vmem:[%s178 + $0x90] sm:$0xf]
        %v222 = vld [vmem:[%s178 + $0x94] sm:$0xf]
        %v223 = vld [vmem:[%s178 + $0x98] sm:$0xf]
        %v224 = vld [vmem:[%s178 + $0x9c] sm:$0xf]
        %v225 = vld [vmem:[%s178 + $0xa0] sm:$0xf]
        %v226 = vld [vmem:[%s178 + $0xa4] sm:$0xf]
        %v227 = vld [vmem:[%s178 + $0xa8] sm:$0xf]
        %v228 = vld [vmem:[%s178 + $0xac] sm:$0xf]
        %v229 = vld [vmem:[%s178 + $0xb0] sm:$0xf]
        %v230 = vld [vmem:[%s178 + $0xb4] sm:$0xf]
        %v231 = vld [vmem:[%s178 + $0xb8] sm:$0xf]
        %v232 = vld [vmem:[%s178 + $0xbc] sm:$0xf]
        %v233 = vld [vmem:[%s178 + $0xc0] sm:$0xf]
        %v234 = vld [vmem:[%s178 + $0xc4] sm:$0xf]
        %v235 = vld [vmem:[%s178 + $0xc8] sm:$0xf]
        %v236 = vld [vmem:[%s178 + $0xcc] sm:$0xf]
        %v237 = vld [vmem:[%s178 + $0xd0] sm:$0xf]
        %v238 = vld [vmem:[%s178 + $0xd4] sm:$0xf]
        %v239 = vld [vmem:[%s178 + $0xd8] sm:$0xf]
        %v240 = vld [vmem:[%s178 + $0xdc] sm:$0xf]
        %v241 = vld [vmem:[%s178 + $0xe0] sm:$0xf]
        %v242 = vld [vmem:[%s178 + $0xe4] sm:$0xf]
        %v243 = vld [vmem:[%s178 + $0xe8] sm:$0xf]
        %v244 = vld [vmem:[%s178 + $0xec] sm:$0xf]
        %v245 = vld [vmem:[%s178 + $0xf0] sm:$0xf]
        %v246 = vld [vmem:[%s178 + $0xf4] sm:$0xf]
        %v247 = vld [vmem:[%s178 + $0xf8] sm:$0xf]
        %v248 = vld [vmem:[%s178 + $0xfc] sm:$0xf]
        %v249 = vld [vmem:[%s178 + $0x100] sm:$0xf]
        %v250 = vld [vmem:[%s178 + $0x104] sm:$0xf]
        %v251 = vld [vmem:[%s178 + $0x108] sm:$0xf]
        %v252 = vld [vmem:[%s178 + $0x10c] sm:$0xf]
        %v253 = vld [vmem:[%s178 + $0x110] sm:$0xf]
        %v254 = vld [vmem:[%s178 + $0x114] sm:$0xf]
        %v255 = vld [vmem:[%s178 + $0x118] sm:$0xf]
        %v256 = vld [vmem:[%s178 + $0x11c] sm:$0xf]
        %v257 = vld [vmem:[%s178 + $0x120] sm:$0xf]
        %v258 = vld [vmem:[%s178 + $0x124] sm:$0xf]
        %v259 = vld [vmem:[%s178 + $0x128] sm:$0xf]
        %v260 = vld [vmem:[%s178 + $0x12c] sm:$0xf]
        %v261 = vld [vmem:[%s178 + $0x130] sm:$0xf]
        %v262 = vld [vmem:[%s178 + $0x134] sm:$0xf]
        %v263 = vld [vmem:[%s178 + $0x138] sm:$0xf]
        %v264 = vld [vmem:[%s178 + $0x13c] sm:$0xf]
        %v265 = vld [vmem:[%s178 + $0x140] sm:$0xf]
        %v266 = vld [vmem:[%s178 + $0x144] sm:$0xf]
        %v267 = vld [vmem:[%s178 + $0x148] sm:$0xf]
        %v268 = vld [vmem:[%s178 + $0x14c] sm:$0xf]
        %v269 = vld [vmem:[%s178 + $0x150] sm:$0xf]
        %v270 = vld [vmem:[%s178 + $0x154] sm:$0xf]
        %v271 = vld [vmem:[%s178 + $0x158] sm:$0xf]
        %v272 = vld [vmem:[%s178 + $0x15c] sm:$0xf]
        %v273 = vld [vmem:[%s178 + $0x160] sm:$0xf]
        %v274 = vld [vmem:[%s178 + $0x164] sm:$0xf]
        %v275 = vld [vmem:[%s178 + $0x168] sm:$0xf]
        %v276 = vld [vmem:[%s178 + $0x16c] sm:$0xf]
        %v277 = vld [vmem:[%s178 + $0x170] sm:$0xf]
        %v278 = vld [vmem:[%s178 + $0x174] sm:$0xf]
        %v279 = vld [vmem:[%s178 + $0x178] sm:$0xf]
        %v280 = vld [vmem:[%s178 + $0x17c] sm:$0xf]
        %v281 = vld [vmem:[%s178 + $0x180] sm:$0xf]
        %v282 = vld [vmem:[%s178 + $0x184] sm:$0xf]
        %v283 = vld [vmem:[%s178 + $0x188] sm:$0xf]
        %v284 = vld [vmem:[%s178 + $0x18c] sm:$0xf]
        %v285 = vld [vmem:[%s178 + $0x190] sm:$0xf]
        %v286 = vld [vmem:[%s178 + $0x194] sm:$0xf]
        %v287 = vld [vmem:[%s178 + $0x198] sm:$0xf]
        %v288 = vld [vmem:[%s178 + $0x19c] sm:$0xf]
        %v289 = vld [vmem:[%s178 + $0x1a0] sm:$0xf]
        %v290 = vld [vmem:[%s178 + $0x1a4] sm:$0xf]
        %v291 = vld [vmem:[%s178 + $0x1a8] sm:$0xf]
        %v292 = vld [vmem:[%s178 + $0x1ac] sm:$0xf]
        %v293 = vld [vmem:[%s178 + $0x1b0] sm:$0xf]
        %v294 = vld [vmem:[%s178 + $0x1b4] sm:$0xf]
        %v295 = vld [vmem:[%s178 + $0x1b8] sm:$0xf]
        %v296 = vld [vmem:[%s178 + $0x1bc] sm:$0xf]
        %v297 = vld [vmem:[%s178 + $0x1c0] sm:$0xf]
        %v298 = vld [vmem:[%s178 + $0x1c4] sm:$0xf]
        %v299 = vld [vmem:[%s178 + $0x1c8] sm:$0xf]
        %v300 = vld [vmem:[%s178 + $0x1cc] sm:$0xf]
        %v301 = vld [vmem:[%s178 + $0x1d0] sm:$0xf]
        %v302 = vld [vmem:[%s178 + $0x1d4] sm:$0xf]
        %v303 = vld [vmem:[%s178 + $0x1d8] sm:$0xf]
        %v304 = vld [vmem:[%s178 + $0x1dc] sm:$0xf]
        %v305 = vld [vmem:[%s178 + $0x1e0] sm:$0xf]
        %v306 = vld [vmem:[%s178 + $0x1e4] sm:$0xf]
        %v307 = vld [vmem:[%s178 + $0x1e8] sm:$0xf]
        %v308 = vld [vmem:[%s178 + $0x1ec] sm:$0xf]
        %v309 = vld [vmem:[%s178 + $0x1f0] sm:$0xf]
        %v310 = vld [vmem:[%s178 + $0x1f4] sm:$0xf]
        %v311 = vld [vmem:[%s178 + $0x1f8] sm:$0xf]
        %v312 = vld [vmem:[%s178 + $0x1fc] sm:$0xf]
        %v315 = vunpack.c.l.b16 %v183
        %v316 = vunpack.c.l.b16 %v184
        %v317 = vpack.c.b16 %v316, %v315
        %v447 = vunpack.c.l.b16 %v185
        %v448 = vunpack.c.l.b16 %v186
        %v449 = vunpack.c.l.b16 %v187
        %v450 = vunpack.c.l.b16 %v188
        %v451 = vunpack.c.l.b16 %v189
        %v452 = vunpack.c.l.b16 %v190
        %v453 = vunpack.c.l.b16 %v191
        %v454 = vunpack.c.l.b16 %v192
        %v455 = vunpack.c.l.b16 %v193
        %v456 = vunpack.c.l.b16 %v194
        %v457 = vunpack.c.l.b16 %v195
        %v458 = vunpack.c.l.b16 %v196
        %v459 = vunpack.c.l.b16 %v197
        %v460 = vunpack.c.l.b16 %v198
        %v461 = vunpack.c.l.b16 %v199
        %v462 = vunpack.c.l.b16 %v200
        %v463 = vunpack.c.l.b16 %v201
        %v464 = vunpack.c.l.b16 %v202
        %v465 = vunpack.c.l.b16 %v203
        %v466 = vunpack.c.l.b16 %v204
        %v467 = vunpack.c.l.b16 %v205
        %v468 = vunpack.c.l.b16 %v206
        %v469 = vunpack.c.l.b16 %v207
        %v470 = vunpack.c.l.b16 %v208
        %v471 = vunpack.c.l.b16 %v209
        %v472 = vunpack.c.l.b16 %v210
        %v473 = vunpack.c.l.b16 %v211
        %v474 = vunpack.c.l.b16 %v212
        %v475 = vunpack.c.l.b16 %v213
        %v476 = vunpack.c.l.b16 %v214
        %v477 = vunpack.c.l.b16 %v215
        %v478 = vunpack.c.l.b16 %v216
        %v479 = vunpack.c.l.b16 %v217
        %v480 = vunpack.c.l.b16 %v218
        %v481 = vunpack.c.l.b16 %v219
        %v482 = vunpack.c.l.b16 %v220
        %v483 = vunpack.c.l.b16 %v221
        %v484 = vunpack.c.l.b16 %v222
        %v485 = vunpack.c.l.b16 %v223
        %v486 = vunpack.c.l.b16 %v224
        %v487 = vunpack.c.l.b16 %v225
        %v488 = vunpack.c.l.b16 %v226
        %v489 = vunpack.c.l.b16 %v227
        %v490 = vunpack.c.l.b16 %v228
        %v491 = vunpack.c.l.b16 %v229
        %v492 = vunpack.c.l.b16 %v230
        %v493 = vunpack.c.l.b16 %v231
        %v494 = vunpack.c.l.b16 %v232
        %v495 = vunpack.c.l.b16 %v233
        %v496 = vunpack.c.l.b16 %v234
        %v497 = vunpack.c.l.b16 %v235
        %v498 = vunpack.c.l.b16 %v236
        %v499 = vunpack.c.l.b16 %v237
        %v500 = vunpack.c.l.b16 %v238
        %v501 = vunpack.c.l.b16 %v239
        %v502 = vunpack.c.l.b16 %v240
        %v503 = vunpack.c.l.b16 %v241
        %v504 = vunpack.c.l.b16 %v242
        %v505 = vunpack.c.l.b16 %v243
        %v506 = vunpack.c.l.b16 %v244
        %v507 = vunpack.c.l.b16 %v245
        %v508 = vunpack.c.l.b16 %v246
        %v509 = vunpack.c.l.b16 %v247
        %v510 = vunpack.c.l.b16 %v248
        %v511 = vunpack.c.l.b16 %v249
        %v512 = vunpack.c.l.b16 %v250
        %v513 = vunpack.c.l.b16 %v251
        %v514 = vunpack.c.l.b16 %v252
        %v515 = vunpack.c.l.b16 %v253
        %v516 = vunpack.c.l.b16 %v254
        %v517 = vunpack.c.l.b16 %v255
        %v518 = vunpack.c.l.b16 %v256
        %v519 = vunpack.c.l.b16 %v257
        %v520 = vunpack.c.l.b16 %v258
        %v521 = vunpack.c.l.b16 %v259
        %v522 = vunpack.c.l.b16 %v260
        %v523 = vunpack.c.l.b16 %v261
        %v524 = vunpack.c.l.b16 %v262
        %v525 = vunpack.c.l.b16 %v263
        %v526 = vunpack.c.l.b16 %v264
        %v527 = vunpack.c.l.b16 %v265
        %v528 = vunpack.c.l.b16 %v266
        %v529 = vunpack.c.l.b16 %v267
        %v530 = vunpack.c.l.b16 %v268
        %v531 = vunpack.c.l.b16 %v269
        %v532 = vunpack.c.l.b16 %v270
        %v533 = vunpack.c.l.b16 %v271
        %v534 = vunpack.c.l.b16 %v272
        %v535 = vunpack.c.l.b16 %v273
        %v536 = vunpack.c.l.b16 %v274
        %v537 = vunpack.c.l.b16 %v275
        %v538 = vunpack.c.l.b16 %v276
        %v539 = vunpack.c.l.b16 %v277
        %v540 = vunpack.c.l.b16 %v278
        %v541 = vunpack.c.l.b16 %v279
        %v542 = vunpack.c.l.b16 %v280
        %v543 = vunpack.c.l.b16 %v281
        %v544 = vunpack.c.l.b16 %v282
        %v545 = vunpack.c.l.b16 %v283
        %v546 = vunpack.c.l.b16 %v284
        %v547 = vunpack.c.l.b16 %v285
        %v548 = vunpack.c.l.b16 %v286
        %v549 = vunpack.c.l.b16 %v287
        %v550 = vunpack.c.l.b16 %v288
        %v551 = vunpack.c.l.b16 %v289
        %v552 = vunpack.c.l.b16 %v290
        %v553 = vunpack.c.l.b16 %v291
        %v554 = vunpack.c.l.b16 %v292
        %v555 = vunpack.c.l.b16 %v293
        %v556 = vunpack.c.l.b16 %v294
        %v557 = vunpack.c.l.b16 %v295
        %v558 = vunpack.c.l.b16 %v296
        %v559 = vunpack.c.l.b16 %v297
        %v560 = vunpack.c.l.b16 %v298
        %v561 = vunpack.c.l.b16 %v299
        %v562 = vunpack.c.l.b16 %v300
        %v563 = vunpack.c.l.b16 %v301
        %v564 = vunpack.c.l.b16 %v302
        %v565 = vunpack.c.l.b16 %v303
        %v566 = vunpack.c.l.b16 %v304
        %v567 = vunpack.c.l.b16 %v305
        %v568 = vunpack.c.l.b16 %v306
        %v569 = vunpack.c.l.b16 %v307
        %v570 = vunpack.c.l.b16 %v308
        %v571 = vunpack.c.l.b16 %v309
        %v572 = vunpack.c.l.b16 %v310
        %v573 = vunpack.c.l.b16 %v311
        %v574 = vunpack.c.l.b16 %v312
        %v575 = vpack.c.b16 %v448, %v447
        %v576 = vpack.c.b16 %v450, %v449
        %v577 = vpack.c.b16 %v452, %v451
        %v578 = vpack.c.b16 %v454, %v453
        %v579 = vpack.c.b16 %v456, %v455
        %v580 = vpack.c.b16 %v458, %v457
        %v581 = vpack.c.b16 %v460, %v459
        %v582 = vpack.c.b16 %v462, %v461
        %v583 = vpack.c.b16 %v464, %v463
        %v584 = vpack.c.b16 %v466, %v465
        %v585 = vpack.c.b16 %v468, %v467
        %v586 = vpack.c.b16 %v470, %v469
        %v587 = vpack.c.b16 %v472, %v471
        %v588 = vpack.c.b16 %v474, %v473
        %v589 = vpack.c.b16 %v476, %v475
        %v590 = vpack.c.b16 %v478, %v477
        %v591 = vpack.c.b16 %v480, %v479
        %v592 = vpack.c.b16 %v482, %v481
        %v593 = vpack.c.b16 %v484, %v483
        %v594 = vpack.c.b16 %v486, %v485
        %v595 = vpack.c.b16 %v488, %v487
        %v596 = vpack.c.b16 %v490, %v489
        %v597 = vpack.c.b16 %v492, %v491
        %v598 = vpack.c.b16 %v494, %v493
        %v599 = vpack.c.b16 %v496, %v495
        %v600 = vpack.c.b16 %v498, %v497
        %v601 = vpack.c.b16 %v500, %v499
        %v602 = vpack.c.b16 %v502, %v501
        %v603 = vpack.c.b16 %v504, %v503
        %v604 = vpack.c.b16 %v506, %v505
        %v605 = vpack.c.b16 %v508, %v507
        %v606 = vpack.c.b16 %v510, %v509
        %v607 = vpack.c.b16 %v512, %v511
        %v608 = vpack.c.b16 %v514, %v513
        %v609 = vpack.c.b16 %v516, %v515
        %v610 = vpack.c.b16 %v518, %v517
        %v611 = vpack.c.b16 %v520, %v519
        %v612 = vpack.c.b16 %v522, %v521
        %v613 = vpack.c.b16 %v524, %v523
        %v614 = vpack.c.b16 %v526, %v525
        %v615 = vpack.c.b16 %v528, %v527
        %v616 = vpack.c.b16 %v530, %v529
        %v617 = vpack.c.b16 %v532, %v531
        %v618 = vpack.c.b16 %v534, %v533
        %v619 = vpack.c.b16 %v536, %v535
        %v620 = vpack.c.b16 %v538, %v537
        %v621 = vpack.c.b16 %v540, %v539
        %v622 = vpack.c.b16 %v542, %v541
        %v623 = vpack.c.b16 %v544, %v543
        %v624 = vpack.c.b16 %v546, %v545
        %v625 = vpack.c.b16 %v548, %v547
        %v626 = vpack.c.b16 %v550, %v549
        %v627 = vpack.c.b16 %v552, %v551
        %v628 = vpack.c.b16 %v554, %v553
        %v629 = vpack.c.b16 %v556, %v555
        %v630 = vpack.c.b16 %v558, %v557
        %v631 = vpack.c.b16 %v560, %v559
        %v632 = vpack.c.b16 %v562, %v561
        %v633 = vpack.c.b16 %v564, %v563
        %v634 = vpack.c.b16 %v566, %v565
        %v635 = vpack.c.b16 %v568, %v567
        %v636 = vpack.c.b16 %v570, %v569
        %v637 = vpack.c.b16 %v572, %v571
        %v638 = vpack.c.b16 %v574, %v573
        %703 = vmatprep.subr.bf16.mxu0 0
        %704 = vmatpush1.bf16.xpose.msra.mxu0 %v582
        %705 = vmatprep.subr.bf16.mxu0 0
        %706 = vmatpush1.bf16.xpose.msra.mxu0 %v581
        %707 = vmatprep.subr.bf16.mxu0 0
        %708 = vmatpush1.bf16.xpose.msra.mxu0 %v580
        %709 = vmatprep.subr.bf16.mxu0 0
        %710 = vmatpush1.bf16.xpose.msra.mxu0 %v579
        %711 = vmatprep.subr.bf16.mxu0 0
        %712 = vmatpush1.bf16.xpose.msra.mxu0 %v578
        %713 = vmatprep.subr.bf16.mxu0 0
        %714 = vmatpush1.bf16.xpose.msra.mxu0 %v577
        %715 = vmatprep.subr.bf16.mxu0 0
        %716 = vmatpush1.bf16.xpose.msra.mxu0 %v576
        %717 = vmatprep.subr.bf16.mxu0 0
        %718 = vmatpush1.bf16.xpose.msra.mxu0 %v575
        %719 = vmatprep.subr.bf16.mxu0 0
        %720 = vmatpush2.bf16.xpose.msra.mxu0 %v590
        %721 = vmatprep.subr.bf16.mxu0 0
        %722 = vmatpush2.bf16.xpose.msra.mxu0 %v589
        %723 = vmatprep.subr.bf16.mxu0 0
        %724 = vmatpush2.bf16.xpose.msra.mxu0 %v588
        %725 = vmatprep.subr.bf16.mxu0 0
        %726 = vmatpush2.bf16.xpose.msra.mxu0 %v587
        %727 = vmatprep.subr.bf16.mxu0 0
        %728 = vmatpush2.bf16.xpose.msra.mxu0 %v586
        %729 = vmatprep.subr.bf16.mxu0 0
        %730 = vmatpush2.bf16.xpose.msra.mxu0 %v585
        %731 = vmatprep.subr.bf16.mxu0 0
        %732 = vmatpush2.bf16.xpose.msra.mxu0 %v584
        %733 = vmatprep.subr.bf16.mxu0 0
        %734 = vmatpush2.bf16.xpose.msra.mxu0 %v583
        %735 = vmatprep.mubr.bf16.mxu0 0
        %736 = vmatmul.mubr.bf16.gmra.mxu0 %v317
        %v737 = vpop.f32.mrf.mxu0
        %v738 = vadd.f32 0.0, %v737
        %v739 = vpop.f32.mrf.mxu0
        %v740 = vadd.f32 0.0, %v739
        %v741 = vpop.f32.mrf.mxu0
        %v742 = vadd.f32 0.0, %v741
        %v743 = vpop.f32.mrf.mxu0
        %v744 = vadd.f32 0.0, %v743
        %745 = vdwg.mxu0
        %746 = vmatprep.subr.bf16.mxu0 0
        %747 = vmatpush1.bf16.xpose.msra.mxu0 %v598
        %748 = vmatprep.subr.bf16.mxu0 0
        %749 = vmatpush1.bf16.xpose.msra.mxu0 %v597
        %750 = vmatprep.subr.bf16.mxu0 0
        %751 = vmatpush1.bf16.xpose.msra.mxu0 %v596
        %752 = vmatprep.subr.bf16.mxu0 0
        %753 = vmatpush1.bf16.xpose.msra.mxu0 %v595
        %754 = vmatprep.subr.bf16.mxu0 0
        %755 = vmatpush1.bf16.xpose.msra.mxu0 %v594
        %756 = vmatprep.subr.bf16.mxu0 0
        %757 = vmatpush1.bf16.xpose.msra.mxu0 %v593
        %758 = vmatprep.subr.bf16.mxu0 0
        %759 = vmatpush1.bf16.xpose.msra.mxu0 %v592
        %760 = vmatprep.subr.bf16.mxu0 0
        %761 = vmatpush1.bf16.xpose.msra.mxu0 %v591
        %762 = vmatprep.subr.bf16.mxu0 0
        %763 = vmatpush2.bf16.xpose.msra.mxu0 %v606
        %764 = vmatprep.subr.bf16.mxu0 0
        %765 = vmatpush2.bf16.xpose.msra.mxu0 %v605
        %766 = vmatprep.subr.bf16.mxu0 0
        %767 = vmatpush2.bf16.xpose.msra.mxu0 %v604
        %768 = vmatprep.subr.bf16.mxu0 0
        %769 = vmatpush2.bf16.xpose.msra.mxu0 %v603
        %770 = vmatprep.subr.bf16.mxu0 0
        %771 = vmatpush2.bf16.xpose.msra.mxu0 %v602
        %772 = vmatprep.subr.bf16.mxu0 0
        %773 = vmatpush2.bf16.xpose.msra.mxu0 %v601
        %774 = vmatprep.subr.bf16.mxu0 0
        %775 = vmatpush2.bf16.xpose.msra.mxu0 %v600
        %776 = vmatprep.subr.bf16.mxu0 0
        %777 = vmatpush2.bf16.xpose.msra.mxu0 %v599
        %778 = vmatprep.mubr.bf16.mxu0 0
        %779 = vmatmul.mubr.bf16.gmra.mxu0 %v317
        %v780 = vpop.f32.mrf.mxu0
        %v781 = vadd.f32 0.0, %v780
        %v782 = vpop.f32.mrf.mxu0
        %v783 = vadd.f32 0.0, %v782
        %v784 = vpop.f32.mrf.mxu0
        %v785 = vadd.f32 0.0, %v784
        %v786 = vpop.f32.mrf.mxu0
        %v787 = vadd.f32 0.0, %v786
        %788 = vdwg.mxu0
        %789 = vmatprep.subr.bf16.mxu0 0
        %790 = vmatpush1.bf16.xpose.msra.mxu0 %v614
        %791 = vmatprep.subr.bf16.mxu0 0
        %792 = vmatpush1.bf16.xpose.msra.mxu0 %v613
        %793 = vmatprep.subr.bf16.mxu0 0
        %794 = vmatpush1.bf16.xpose.msra.mxu0 %v612
        %795 = vmatprep.subr.bf16.mxu0 0
        %796 = vmatpush1.bf16.xpose.msra.mxu0 %v611
        %797 = vmatprep.subr.bf16.mxu0 0
        %798 = vmatpush1.bf16.xpose.msra.mxu0 %v610
        %799 = vmatprep.subr.bf16.mxu0 0
        %800 = vmatpush1.bf16.xpose.msra.mxu0 %v609
        %801 = vmatprep.subr.bf16.mxu0 0
        %802 = vmatpush1.bf16.xpose.msra.mxu0 %v608
        %803 = vmatprep.subr.bf16.mxu0 0
        %804 = vmatpush1.bf16.xpose.msra.mxu0 %v607
        %805 = vmatprep.subr.bf16.mxu0 0
        %806 = vmatpush2.bf16.xpose.msra.mxu0 %v622
        %807 = vmatprep.subr.bf16.mxu0 0
        %808 = vmatpush2.bf16.xpose.msra.mxu0 %v621
        %809 = vmatprep.subr.bf16.mxu0 0
        %810 = vmatpush2.bf16.xpose.msra.mxu0 %v620
        %811 = vmatprep.subr.bf16.mxu0 0
        %812 = vmatpush2.bf16.xpose.msra.mxu0 %v619
        %813 = vmatprep.subr.bf16.mxu0 0
        %814 = vmatpush2.bf16.xpose.msra.mxu0 %v618
        %815 = vmatprep.subr.bf16.mxu0 0
        %816 = vmatpush2.bf16.xpose.msra.mxu0 %v617
        %817 = vmatprep.subr.bf16.mxu0 0
        %818 = vmatpush2.bf16.xpose.msra.mxu0 %v616
        %819 = vmatprep.subr.bf16.mxu0 0
        %820 = vmatpush2.bf16.xpose.msra.mxu0 %v615
        %821 = vmatprep.mubr.bf16.mxu0 0
        %822 = vmatmul.mubr.bf16.gmra.mxu0 %v317
        %v823 = vpop.f32.mrf.mxu0
        %v824 = vadd.f32 0.0, %v823
        %v825 = vpop.f32.mrf.mxu0
        %v826 = vadd.f32 0.0, %v825
        %v827 = vpop.f32.mrf.mxu0
        %v828 = vadd.f32 0.0, %v827
        %v829 = vpop.f32.mrf.mxu0
        %v830 = vadd.f32 0.0, %v829
        %831 = vdwg.mxu0
        %832 = vmatprep.subr.bf16.mxu0 0
        %833 = vmatpush1.bf16.xpose.msra.mxu0 %v630
        %834 = vmatprep.subr.bf16.mxu0 0
        %835 = vmatpush1.bf16.xpose.msra.mxu0 %v629
        %836 = vmatprep.subr.bf16.mxu0 0
        %837 = vmatpush1.bf16.xpose.msra.mxu0 %v628
        %838 = vmatprep.subr.bf16.mxu0 0
        %839 = vmatpush1.bf16.xpose.msra.mxu0 %v627
        %840 = vmatprep.subr.bf16.mxu0 0
        %841 = vmatpush1.bf16.xpose.msra.mxu0 %v626
        %842 = vmatprep.subr.bf16.mxu0 0
        %843 = vmatpush1.bf16.xpose.msra.mxu0 %v625
        %844 = vmatprep.subr.bf16.mxu0 0
        %845 = vmatpush1.bf16.xpose.msra.mxu0 %v624
        %846 = vmatprep.subr.bf16.mxu0 0
        %847 = vmatpush1.bf16.xpose.msra.mxu0 %v623
        %848 = vmatprep.subr.bf16.mxu0 0
        %849 = vmatpush2.bf16.xpose.msra.mxu0 %v638
        %850 = vmatprep.subr.bf16.mxu0 0
        %851 = vmatpush2.bf16.xpose.msra.mxu0 %v637
        %852 = vmatprep.subr.bf16.mxu0 0
        %853 = vmatpush2.bf16.xpose.msra.mxu0 %v636
        %854 = vmatprep.subr.bf16.mxu0 0
        %855 = vmatpush2.bf16.xpose.msra.mxu0 %v635
        %856 = vmatprep.subr.bf16.mxu0 0
        %857 = vmatpush2.bf16.xpose.msra.mxu0 %v634
        %858 = vmatprep.subr.bf16.mxu0 0
        %859 = vmatpush2.bf16.xpose.msra.mxu0 %v633
        %860 = vmatprep.subr.bf16.mxu0 0
        %861 = vmatpush2.bf16.xpose.msra.mxu0 %v632
        %862 = vmatprep.subr.bf16.mxu0 0
        %863 = vmatpush2.bf16.xpose.msra.mxu0 %v631
        %864 = vmatprep.mubr.bf16.mxu0 0
        %865 = vmatmul.mubr.bf16.gmra.mxu0 %v317
        %v866 = vpop.f32.mrf.mxu0
        %v867 = vadd.f32 0.0, %v866
        %v868 = vpop.f32.mrf.mxu0
        %v869 = vadd.f32 0.0, %v868
        %v870 = vpop.f32.mrf.mxu0
        %v871 = vadd.f32 0.0, %v870
        %v872 = vpop.f32.mrf.mxu0
        %v873 = vadd.f32 0.0, %v872
        %874 = vdwg.mxu0
        %875 = vst [vmem:[%s167] sm:$0xff] %v738
        %876 = vst [vmem:[%s167 + $0x8] sm:$0xff] %v740
        %877 = vst [vmem:[%s167 + $0x10] sm:$0xff] %v781
        %878 = vst [vmem:[%s167 + $0x18] sm:$0xff] %v783
        %879 = vst [vmem:[%s167 + $0x20] sm:$0xff] %v824
        %880 = vst [vmem:[%s167 + $0x28] sm:$0xff] %v826
        %881 = vst [vmem:[%s167 + $0x30] sm:$0xff] %v867
        %882 = vst [vmem:[%s167 + $0x38] sm:$0xff] %v869
        %883 = vst [vmem:[%s167 + $0x40] sm:$0xff] %v742
        %884 = vst [vmem:[%s167 + $0x48] sm:$0xff] %v744
        %885 = vst [vmem:[%s167 + $0x50] sm:$0xff] %v785
        %886 = vst [vmem:[%s167 + $0x58] sm:$0xff] %v787
        %887 = vst [vmem:[%s167 + $0x60] sm:$0xff] %v828
        %888 = vst [vmem:[%s167 + $0x68] sm:$0xff] %v830
        %889 = vst [vmem:[%s167 + $0x70] sm:$0xff] %v871
        %890 = vst [vmem:[%s167 + $0x78] sm:$0xff] %v873
        %s891 = sand.u32 %s90, 1
        %s892 = scalar_lea.sflag [#allocation3], %s891
        %s893 = sand.u32 %s90, 1
        %s894 = smul.addr %s893, 128
        %s895 = scalar_lea.vmem [#allocation2], %s894
        // Predicated region
        $region29: #{word2vec_forward.1} parent=27 // pred_check
          %p896 = pneg %p100
        $region30: #{word2vec_forward.1} parent=27 // pred_check_branch
          %898 = sbr.rel (%p896) target = $region32
        $region31: #{word2vec_forward.1} parent=27 // pred_region
          %s899 = smul.u32 2, %s21
          %s900 = smul.u32 8, %s20
          %s902 = ssub.s32 2048, 2048
          %903 = vsyncadd %s892, %s902
          %s904 = smul.addr %s899, 16
          %s905 = sadd.s32 %s900, %s904
          %s906 = smul.addr %s905, 128
          %s907 = scalar_lea.hbm %s2, %s906
          %s908 = sshll.u32 %s895, 4
          %s909 = int_to_ptr.vmem [resolvable:$true] %s908
          %914 = dma.vmem_to_hbm [thread:$0]  %s909, 2048, %s907, %s892, 1024, 2048, 64
        $region32: #{word2vec_forward.1} parent=27 // pred_fallthru
          _
      $region28: #{word2vec_forward.1} parent=5 // pred_fallthru
        _
      %p915 = scmp.le.s32.totalorder 2, %s11
      // Predicated region
      $region33: #{word2vec_forward.1} parent=5 // pred_check
        %p916 = pneg %p915
      $region34: #{word2vec_forward.1} parent=5 // pred_check_branch
        %918 = sbr.rel (%p916) target = $region36
      $region35: #{word2vec_forward.1} parent=5 // pred_region
        %s919 = ssub.s32 %s11, 2
        // Predicated region
        $region37: #{word2vec_forward.1} parent=35 // pred_check
          %p920 = pneg %p106
        $region38: #{word2vec_forward.1} parent=35 // pred_check_branch
          %922 = sbr.rel (%p920) target = $region40
        $region39: #{word2vec_forward.1} parent=35 // pred_region
          %s923 = sand.u32 %s91, 1
          %s924 = scalar_lea.sflag [#allocation3], %s923
          %s925 = sand.u32 %s91, 1
          %s926 = smul.addr %s925, 128
          %s927 = scalar_lea.vmem [#allocation2], %s926
          %928 = dma.done %s924, 2048
        $region40: #{word2vec_forward.1} parent=35 // pred_fallthru
          _
      $region36: #{word2vec_forward.1} parent=5 // pred_fallthru
        _
    $region6: #{word2vec_forward.1} parent=1 // loop_footer
      %s15 = sadd.s32 1, %s11
    $region7: #{word2vec_forward.1} parent=1 // loop_footer_branch
      %10 = sbr.rel target = $region3
    $region8: #{word2vec_forward.1} parent=1 // loop_exit
      _
    %929 = vsyncpa [#allocation3], 1
    %s930 = scalar_lea.sflag [#allocation3], 1
    %931 = vsyncpa %s930, 1

</llo_original>
